<compile_context>
chip_gen: v7x
topology: tpu7x:2x2x1
jax: 0.10.0
libtpu: 0.0.40
codegen_flags: <defaults>
</compile_context>

<pallas_src>
import jax
import jax.numpy as jnp
from jax.experimental import pallas as pl
from jax.experimental.pallas import tpu as pltpu


def qnetwork_kernel(x_ref, w1_ref, b1_ref, w2_ref, b2_ref, w3t_ref, b3t_ref, o_ref):
    # Layer 1: Linear(obs -> h1) + ReLU  (bf16 MXU operands, f32 accumulation / bias / ReLU)
    h1 = jnp.dot(x_ref[...], w1_ref[...], preferred_element_type=jnp.float32) + b1_ref[...]
    h1 = jnp.maximum(h1, 0.0).astype(jnp.bfloat16)
    # Layer 2: Linear(h1 -> h2) + ReLU
    h2 = jnp.dot(h1, w2_ref[...], preferred_element_type=jnp.float32) + b2_ref[...]
    h2 = jnp.maximum(h2, 0.0).astype(jnp.bfloat16)
    # Layer 3 (transposed): (A_pad, H2) contracted with (TB, H2) over H2 -> (A_pad, TB).
    # Output block is 8 sublanes x TB lanes: lane-dense, ~16x fewer writeback bytes than a
    # 128-lane f32 slab padded from num_actions=2.
    q_t = jax.lax.dot_general(
        w3t_ref[...], h2,
        dimension_numbers=(((1,), (1,)), ((), ())),
        preferred_element_type=jnp.float32,
    )
    o_ref[...] = q_t + b3t_ref[...]
    # TODO(synk): if callers only need greedy actions / max-Q, fuse max/argmax over the
    # action sublanes here (masking padded action rows to -inf) instead of returning Q-values.


def _round_up(n: int, m: int) -> int:
    return ((n + m - 1) // m) * m


def _pad2(a, rows, cols, dtype):
    """Zero-pad a 2-D array to (rows, cols) and cast to dtype."""
    out = jnp.zeros((rows, cols), dtype)
    return out.at[: a.shape[0], : a.shape[1]].set(a.astype(dtype))


def pad_params(params):
    """One-time padding/casting of QNetwork params for the kernel (hoisted out of the hot path).

    Returns dict of: w1 (D_IN,H1) bf16, b1 (1,H1) f32, w2 (H1,H2) bf16, b2 (1,H2) f32,
    w3t (A_pad,H2) bf16 (transposed last layer), b3t (A_pad,1) f32.
    """
    w1, b1, w2, b2, w3, b3 = (params[k] for k in ("w1", "b1", "w2", "b2", "w3", "b3"))
    d_obs, h1 = w1.shape
    h2 = w2.shape[1]
    num_actions = w3.shape[1]

    D_IN = max(_round_up(d_obs, 8), 8)        # sublane-aligned obs dim
    H1 = _round_up(h1, 128)                   # lane-aligned hidden dims
    H2 = _round_up(h2, 128)
    A_PAD = max(_round_up(num_actions, 8), 8)  # sublane-aligned action dim (transposed out)

    return {
        "w1": _pad2(w1, D_IN, H1, jnp.bfloat16),
        "b1": _pad2(b1, 1, H1, jnp.float32),
        "w2": _pad2(w2, H1, H2, jnp.bfloat16),
        "b2": _pad2(b2, 1, H2, jnp.float32),
        "w3t": _pad2(w3.T, A_PAD, H2, jnp.bfloat16),
        "b3t": _pad2(b3.reshape(-1, 1), A_PAD, 1, jnp.float32),
    }


def qnetwork_forward(x, padded, num_actions, *, tb: int = 512):
    """x: (B, dim_obs) f32.  padded: output of pad_params().  Returns (B, num_actions) f32."""
    B, _ = x.shape
    D_IN, H1 = padded["w1"].shape
    H2 = padded["w2"].shape[1]
    A_PAD = padded["w3t"].shape[0]

    # Batch tiling: small batches -> one full tile (grid=1, no padded-row compute);
    # large batches -> lane-aligned tiles (multiple of 128, needed for the transposed output).
    if B <= tb:
        TB = _round_up(B, 8)
        B_pad = TB
    else:
        TB = _round_up(tb, 128)
        B_pad = _round_up(B, TB)
    grid = (B_pad // TB,)

    # Only the activations are padded per call; weights were padded once in pad_params().
    x_p = _pad2(x, B_pad, D_IN, jnp.bfloat16)

    cost = pl.CostEstimate(
        flops=2 * B_pad * (D_IN * H1 + H1 * H2 + H2 * A_PAD),
        transcendentals=0,
        bytes_accessed=(
            x_p.size * 2
            + (padded["w1"].size + padded["w2"].size + padded["w3t"].size) * 2
            + (padded["b1"].size + padded["b2"].size + padded["b3t"].size) * 4
            + A_PAD * B_pad * 4
        ),
    )

    out_t = pl.pallas_call(
        qnetwork_kernel,
        out_shape=jax.ShapeDtypeStruct((A_PAD, B_pad), jnp.float32),
        grid=grid,
        in_specs=[
            # Activations: tiled along batch (software-pipelined / double-buffered).
            pl.BlockSpec((TB, D_IN), lambda i: (i, 0)),
            # Weights / biases: constant block index -> resident in VMEM across all tiles.
            pl.BlockSpec((D_IN, H1), lambda i: (0, 0)),
            pl.BlockSpec((1, H1), lambda i: (0, 0)),
            pl.BlockSpec((H1, H2), lambda i: (0, 0)),
            pl.BlockSpec((1, H2), lambda i: (0, 0)),
            pl.BlockSpec((A_PAD, H2), lambda i: (0, 0)),
            pl.BlockSpec((A_PAD, 1), lambda i: (0, 0)),
        ],
        # Transposed output: actions on sublanes, batch on lanes.
        out_specs=pl.BlockSpec((A_PAD, TB), lambda i: (0, i)),
        compiler_params=pltpu.CompilerParams(dimension_semantics=("parallel",)),
        cost_estimate=cost,
    )(x_p, padded["w1"], padded["b1"], padded["w2"], padded["b2"],
      padded["w3t"], padded["b3t"])

    # Tiny (num_actions, B) -> (B, num_actions) transpose + slice in the wrapper.
    return out_t[:num_actions, :B].T


def init_params(key, dim_observation, num_actions, hidden_sizes=(120, 84)):
    """Deterministic init mimicking PyTorch nn.Linear default (U(-1/sqrt(fan_in), +1/sqrt(fan_in)))."""
    sizes = [dim_observation, *hidden_sizes, num_actions]
    params = {}
    for idx, (fan_in, fan_out) in enumerate(zip(sizes[:-1], sizes[1:]), start=1):
        key, kw, kb = jax.random.split(key, 3)
        bound = 1.0 / jnp.sqrt(jnp.float32(fan_in))
        params[f"w{idx}"] = jax.random.uniform(
            kw, (fan_in, fan_out), jnp.float32, minval=-bound, maxval=bound)
        params[f"b{idx}"] = jax.random.uniform(
            kb, (1, fan_out), jnp.float32, minval=-bound, maxval=bound)
    return params


def reference_forward(x, p):
    """Pure-JAX reference mirroring the kernel's bf16 operands + f32 accumulation.
    (Differs from a pure-f32 PyTorch QNetwork only by bf16 rounding of operands.)"""
    bf = lambda a: a.astype(jnp.bfloat16).astype(jnp.float32)
    h1 = jnp.maximum(bf(x) @ bf(p["w1"]) + p["b1"], 0.0)
    h2 = jnp.maximum(bf(h1) @ bf(p["w2"]) + p["b2"], 0.0)
    return bf(h2) @ bf(p["w3"]) + p["b3"]


if __name__ == "__main__":
    key = jax.random.PRNGKey(0)
    dim_observation = 4      # e.g. CartPole observation dim
    num_actions = 2

    kx1, kx2, kp = jax.random.split(key, 3)
    params = init_params(kp, dim_observation, num_actions, hidden_sizes=(120, 84))
    padded = pad_params(params)   # one-time padding/cast, out of the hot path

    # Case 1: small batch -> single full-batch tile, grid=(1,).
    x_small = jax.random.normal(kx1, (64, dim_observation), jnp.float32)
    out_small = jax.block_until_ready(qnetwork_forward(x_small, padded, num_actions))
    ref_small = reference_forward(x_small, params)
    assert out_small.shape == (64, num_actions)
    assert jnp.allclose(out_small, ref_small, atol=1e-3, rtol=1e-3), "mismatch (small batch)"

    # Case 2: batch > tile -> pipelined multi-step grid (tb=128 -> grid=(3,)), padded rows sliced off.
    x_big = jax.random.normal(kx2, (300, dim_observation), jnp.float32)
    out_big = jax.block_until_ready(qnetwork_forward(x_big, padded, num_actions, tb=128))
    ref_big = reference_forward(x_big, params)
    assert out_big.shape == (300, num_actions)
    assert jnp.allclose(out_big, ref_big, atol=1e-3, rtol=1e-3), "mismatch (tiled batch)"

    print("KERNEL_OK")
</pallas_src>

<mosaic_0001>
module attributes {stable_mosaic.version = 11 : i64} {
  func.func @qnetwork_kernel(%arg0: i32, %arg1: memref<64x8xbf16, #tpu.memory_space<vmem>>, %arg2: memref<8x128xbf16, #tpu.memory_space<vmem>>, %arg3: memref<1x128xf32, #tpu.memory_space<vmem>>, %arg4: memref<128x128xbf16, #tpu.memory_space<vmem>>, %arg5: memref<1x128xf32, #tpu.memory_space<vmem>>, %arg6: memref<8x128xbf16, #tpu.memory_space<vmem>>, %arg7: memref<8x1xf32, #tpu.memory_space<vmem>>, %arg8: memref<8x64xf32, #tpu.memory_space<vmem>>) attributes {dimension_semantics = [#tpu.dimension_semantics<parallel>], iteration_bounds = array<i64: 1>, scalar_prefetch = 0 : i64, scratch_operands = 0 : i64, tpu.core_type = #tpu.core_type<tc>, window_params = [{transform_indices = @transform_0, window_bounds = array<i64: 64, 8>}, {pipeline_mode = #tpu.pipeline_mode<synchronous>, transform_indices = @transform_1, window_bounds = array<i64: 8, 128>}, {pipeline_mode = #tpu.pipeline_mode<synchronous>, transform_indices = @transform_2, window_bounds = array<i64: 1, 128>}, {pipeline_mode = #tpu.pipeline_mode<synchronous>, transform_indices = @transform_3, window_bounds = array<i64: 128, 128>}, {pipeline_mode = #tpu.pipeline_mode<synchronous>, transform_indices = @transform_4, window_bounds = array<i64: 1, 128>}, {pipeline_mode = #tpu.pipeline_mode<synchronous>, transform_indices = @transform_5, window_bounds = array<i64: 8, 128>}, {pipeline_mode = #tpu.pipeline_mode<synchronous>, transform_indices = @transform_6, window_bounds = array<i64: 8, 1>}, {transform_indices = @transform_7, window_bounds = array<i64: 8, 64>}]} {
    %c0 = arith.constant 0 : index
    %c0_0 = arith.constant 0 : index
    %0 = vector.load %arg1[%c0, %c0_0] : memref<64x8xbf16, #tpu.memory_space<vmem>>, vector<64x8xbf16>
    %c0_1 = arith.constant 0 : index
    %c0_2 = arith.constant 0 : index
    %1 = vector.load %arg2[%c0_1, %c0_2] : memref<8x128xbf16, #tpu.memory_space<vmem>>, vector<8x128xbf16>
    %cst = arith.constant dense<0.000000e+00> : vector<64x128xf32>
    %2 = tpu.matmul %0, %1, %cst {dimension_numbers = #tpu.dot_dimension_numbers<[1], [0], [0], [1], [0, 0, 1, 1], [], []>} : vector<64x8xbf16>, vector<8x128xbf16>, vector<64x128xf32> -> vector<64x128xf32>
    %c0_3 = arith.constant 0 : index
    %c0_4 = arith.constant 0 : index
    %3 = vector.load %arg3[%c0_3, %c0_4] : memref<1x128xf32, #tpu.memory_space<vmem>>, vector<1x128xf32>
    %4 = vector.broadcast %3 : vector<1x128xf32> to vector<64x128xf32>
    %5 = arith.addf %2, %4 : vector<64x128xf32>
    %cst_5 = arith.constant 0.000000e+00 : f32
    %6 = vector.broadcast %cst_5 : f32 to vector<64x128xf32>
    %7 = arith.maximumf %5, %6 : vector<64x128xf32>
    %8 = arith.truncf %7 : vector<64x128xf32> to vector<64x128xbf16>
    %c0_6 = arith.constant 0 : index
    %c0_7 = arith.constant 0 : index
    %9 = vector.load %arg4[%c0_6, %c0_7] : memref<128x128xbf16, #tpu.memory_space<vmem>>, vector<128x128xbf16>
    %cst_8 = arith.constant dense<0.000000e+00> : vector<64x128xf32>
    %10 = tpu.matmul %8, %9, %cst_8 {dimension_numbers = #tpu.dot_dimension_numbers<[1], [0], [0], [1], [0, 0, 1, 1], [], []>} : vector<64x128xbf16>, vector<128x128xbf16>, vector<64x128xf32> -> vector<64x128xf32>
    %c0_9 = arith.constant 0 : index
    %c0_10 = arith.constant 0 : index
    %11 = vector.load %arg5[%c0_9, %c0_10] : memref<1x128xf32, #tpu.memory_space<vmem>>, vector<1x128xf32>
    %12 = vector.broadcast %11 : vector<1x128xf32> to vector<64x128xf32>
    %13 = arith.addf %10, %12 : vector<64x128xf32>
    %cst_11 = arith.constant 0.000000e+00 : f32
    %14 = vector.broadcast %cst_11 : f32 to vector<64x128xf32>
    %15 = arith.maximumf %13, %14 : vector<64x128xf32>
    %16 = arith.truncf %15 : vector<64x128xf32> to vector<64x128xbf16>
    %c0_12 = arith.constant 0 : index
    %c0_13 = arith.constant 0 : index
    %17 = vector.load %arg6[%c0_12, %c0_13] : memref<8x128xbf16, #tpu.memory_space<vmem>>, vector<8x128xbf16>
    %cst_14 = arith.constant dense<0.000000e+00> : vector<8x64xf32>
    %18 = tpu.matmul %17, %16, %cst_14 {dimension_numbers = #tpu.dot_dimension_numbers<[1], [1], [0], [0], [0, 0, 1, 0], [], []>} : vector<8x128xbf16>, vector<64x128xbf16>, vector<8x64xf32> -> vector<8x64xf32>
    %c0_15 = arith.constant 0 : index
    %c0_16 = arith.constant 0 : index
    %19 = vector.load %arg7[%c0_15, %c0_16] : memref<8x1xf32, #tpu.memory_space<vmem>>, vector<8x1xf32>
    %20 = vector.broadcast %19 : vector<8x1xf32> to vector<8x64xf32>
    %21 = arith.addf %18, %20 : vector<8x64xf32>
    %c0_17 = arith.constant 0 : index
    %c0_18 = arith.constant 0 : index
    %22 = vector.load %arg8[%c0_17, %c0_18] : memref<8x64xf32, #tpu.memory_space<vmem>>, vector<8x64xf32>
    tpu.vector_store %arg8[%c0_17, %c0_18], %21 {strides = array<i32>} : memref<8x64xf32, #tpu.memory_space<vmem>>, vector<8x64xf32>,
    return
  }
  func.func @transform_0(%arg0: i32) -> (i32, i32) {
    %c0_i32 = arith.constant 0 : i32
    %c0_i32_0 = arith.constant 0 : i32
    return %arg0, %c0_i32 : i32, i32
  }
  func.func @transform_1(%arg0: i32) -> (i32, i32) {
    %c0_i32 = arith.constant 0 : i32
    %c0_i32_0 = arith.constant 0 : i32
    %c0_i32_1 = arith.constant 0 : i32
    return %c0_i32, %c0_i32_0 : i32, i32
  }
  func.func @transform_2(%arg0: i32) -> (i32, i32) {
    %c0_i32 = arith.constant 0 : i32
    %c0_i32_0 = arith.constant 0 : i32
    %c0_i32_1 = arith.constant 0 : i32
    return %c0_i32, %c0_i32_0 : i32, i32
  }
  func.func @transform_3(%arg0: i32) -> (i32, i32) {
    %c0_i32 = arith.constant 0 : i32
    %c0_i32_0 = arith.constant 0 : i32
    %c0_i32_1 = arith.constant 0 : i32
    return %c0_i32, %c0_i32_0 : i32, i32
  }
  func.func @transform_4(%arg0: i32) -> (i32, i32) {
    %c0_i32 = arith.constant 0 : i32
    %c0_i32_0 = arith.constant 0 : i32
    %c0_i32_1 = arith.constant 0 : i32
    return %c0_i32, %c0_i32_0 : i32, i32
  }
  func.func @transform_5(%arg0: i32) -> (i32, i32) {
    %c0_i32 = arith.constant 0 : i32
    %c0_i32_0 = arith.constant 0 : i32
    %c0_i32_1 = arith.constant 0 : i32
    return %c0_i32, %c0_i32_0 : i32, i32
  }
  func.func @transform_6(%arg0: i32) -> (i32, i32) {
    %c0_i32 = arith.constant 0 : i32
    %c0_i32_0 = arith.constant 0 : i32
    %c0_i32_1 = arith.constant 0 : i32
    return %c0_i32, %c0_i32_0 : i32, i32
  }
  func.func @transform_7(%arg0: i32) -> (i32, i32) {
    %c0_i32 = arith.constant 0 : i32
    %c0_i32_0 = arith.constant 0 : i32
    return %c0_i32, %arg0 : i32, i32
  }
}

</mosaic_0001>

<llo_original>
// kernel: tpu_custom_call.1
$region0: #{tpu_custom_call.1}
  #allocation0 [shape = 'u32[]', space=smem, size = 0x4, offset = 0x4, fixed_abs, tag = 'smem constant byte address 0x4 - core index']
  #allocation1 [shape = 'u32[144,128]{1,0:T(1,128)}', space=vmem, size = 0x12000, scoped, tag = 'internal scratch']
  %s0 = inlined_call_operand.vmem [shape: bf16[64,8], index: 0, kind: input, shape index: {}]
  %s1 = inlined_call_operand.vmem [shape: bf16[8,128], index: 1, kind: input, shape index: {}]
  %s2 = inlined_call_operand.vmem [shape: f32[1,128], index: 2, kind: input, shape index: {}]
  %s3 = inlined_call_operand.hbm [shape: bf16[128,128], index: 3, kind: input, shape index: {}]
  %s4 = inlined_call_operand.vmem [shape: f32[1,128], index: 4, kind: input, shape index: {}]
  %s5 = inlined_call_operand.vmem [shape: bf16[8,128], index: 5, kind: input, shape index: {}]
  %s6 = inlined_call_operand.vmem [shape: f32[8,1], index: 6, kind: input, shape index: {}]
  %s7 = inlined_call_operand.hbm [shape: f32[8,64], index: 7, kind: output, shape index: {}]
  %s8 = sld [smem:[#allocation0]]
  $region42: #{tpu_custom_call.1} parent=0
    _
  %s10 = ssub.s32 1, %s8
  %s11 = scalar_select 0, %s10, %s8
  $region1: #{tpu_custom_call.1} parent=0
    #allocation2 [shape = 'u8[32768]{0}', space=vmem, size = 0x8000, scoped, tag = 'input window, operand 3, single buffered']
    #allocation3 [shape = 's32[1]{0}', space=sflag, size = 0x4, scoped, tag = 'scoped memory for tpu_custom_call.1']
    #allocation4 [shape = 's32[1]{0}', space=sflag, size = 0x4, scoped, tag = 'scoped memory for tpu_custom_call.1']
    #allocation5 [shape = 'u8[4096]{0}', space=vmem, size = 0x1000, scoped, tag = 'output window, operand 0, single buffered']
    %12 = vsyncpa [#allocation3], 0
    %13 = vsyncpa [#allocation4], 0
    // Predicated region
    $region2: #{tpu_custom_call.1} parent=1 // pred_check
      _
    $region3: #{tpu_custom_call.1} parent=1 // pred_check_branch
      %15 = sbr.rel (0) target = $region5
    $region4: #{tpu_custom_call.1} parent=1 // pred_region
      _
    $region5: #{tpu_custom_call.1} parent=1 // pred_fallthru
      _
    // Predicated region
    $region6: #{tpu_custom_call.1} parent=1 // pred_check
      _
    $region7: #{tpu_custom_call.1} parent=1 // pred_check_branch
      %17 = sbr.rel (0) target = $region9
    $region8: #{tpu_custom_call.1} parent=1 // pred_region
      _
    $region9: #{tpu_custom_call.1} parent=1 // pred_fallthru
      _
    // Predicated region
    $region10: #{tpu_custom_call.1} parent=1 // pred_check
      _
    $region11: #{tpu_custom_call.1} parent=1 // pred_check_branch
      %19 = sbr.rel (0) target = $region13
    $region12: #{tpu_custom_call.1} parent=1 // pred_region
      _
    $region13: #{tpu_custom_call.1} parent=1 // pred_fallthru
      _
    // Predicated region
    $region14: #{tpu_custom_call.1} parent=1 // pred_check
      _
    $region15: #{tpu_custom_call.1} parent=1 // pred_check_branch
      %21 = sbr.rel (0) target = $region17
    $region16: #{tpu_custom_call.1} parent=1 // pred_region
      %s23 = ssub.s32 1024, 1024
      %24 = vsyncadd [#allocation3], %s23
      %s25 = sshll.u32 [#allocation2], 4
      %s26 = int_to_ptr.vmem [resolvable:$true] %s25
      %31 = dma.hbm_to_vmem [thread:$0]  %s3, 1024, %s26, [#allocation3], 64, 64, 4
    $region17: #{tpu_custom_call.1} parent=1 // pred_fallthru
      _
    // Predicated region
    $region18: #{tpu_custom_call.1} parent=1 // pred_check
      _
    $region19: #{tpu_custom_call.1} parent=1 // pred_check_branch
      %33 = sbr.rel (0) target = $region21
    $region20: #{tpu_custom_call.1} parent=1 // pred_region
      _
    $region21: #{tpu_custom_call.1} parent=1 // pred_fallthru
      _
    // Predicated region
    $region22: #{tpu_custom_call.1} parent=1 // pred_check
      _
    $region23: #{tpu_custom_call.1} parent=1 // pred_check_branch
      %35 = sbr.rel (0) target = $region25
    $region24: #{tpu_custom_call.1} parent=1 // pred_region
      _
    $region25: #{tpu_custom_call.1} parent=1 // pred_fallthru
      _
    // Predicated region
    $region26: #{tpu_custom_call.1} parent=1 // pred_check
      _
    $region27: #{tpu_custom_call.1} parent=1 // pred_check_branch
      %37 = sbr.rel (0) target = $region29
    $region28: #{tpu_custom_call.1} parent=1 // pred_region
      _
    $region29: #{tpu_custom_call.1} parent=1 // pred_fallthru
      _
    // Predicated region
    $region30: #{tpu_custom_call.1} parent=1 // pred_check
      _
    $region31: #{tpu_custom_call.1} parent=1 // pred_check_branch
      %39 = sbr.rel (0) target = $region33
    $region32: #{tpu_custom_call.1} parent=1 // pred_region
      %40 = dma.done [#allocation3], 1024
    $region33: #{tpu_custom_call.1} parent=1 // pred_fallthru
      _
    %v42 = vld [vmem:[%s0] sm:$0xf]
    %v43 = vld [vmem:[%s0 + $0x4] sm:$0xf]
    %v44 = vld [vmem:[%s0 + $0x8] sm:$0xf]
    %v45 = vld [vmem:[%s0 + $0xc] sm:$0xf]
    %v46 = vld [vmem:[%s0 + $0x10] sm:$0xf]
    %v47 = vld [vmem:[%s0 + $0x14] sm:$0xf]
    %v48 = vld [vmem:[%s0 + $0x18] sm:$0xf]
    %v49 = vld [vmem:[%s0 + $0x1c] sm:$0xf]
    %v50 = vld [vmem:[%s1] sm:$0xf]
    %v51 = vld [vmem:[%s2] sm:$0x1]
    %v53 = vlaneseq
    %v54 = vshrl.u32 %v53, 7
    %v55 = vsub.s32 0, %v54
    %v56 = vrot.slane %v51, %v55
    %v66 = vunpack.c.l.b16 %v42
    %v67 = vunpack.c.l.b16 %v43
    %v68 = vunpack.c.l.b16 %v44
    %v69 = vunpack.c.l.b16 %v45
    %v70 = vunpack.c.l.b16 %v46
    %v71 = vunpack.c.l.b16 %v47
    %v72 = vunpack.c.l.b16 %v48
    %v73 = vunpack.c.l.b16 %v49
    %v74 = vpack.c.b16 %v67, %v66
    %v75 = vpack.c.b16 %v69, %v68
    %v76 = vpack.c.b16 %v71, %v70
    %v77 = vpack.c.b16 %v73, %v72
    %vm78 = vcmask 64512
    %v80 = vsel %vm78, %v74, 0
    %v83 = vsel %vm78, %v75, 0
    %v86 = vsel %vm78, %v76, 0
    %v89 = vsel %vm78, %v77, 0
    %vm91 = vcmask 1043456
    %v93 = vsel %vm91, %v50, 0
    %95 = vmatprep.subr.bf16.mxu0 0
    %96 = vmatpush1.bf16.msra.mxu0 %v93
    %97 = vmatprep.subr.bf16.mxu0 0
    %98 = vmatpush1.bf16.msra.mxu0 0
    %99 = vmatprep.subr.bf16.mxu0 0
    %100 = vmatpush1.bf16.msra.mxu0 0
    %101 = vmatprep.subr.bf16.mxu0 0
    %102 = vmatpush1.bf16.msra.mxu0 0
    %103 = vmatprep.subr.bf16.mxu0 0
    %104 = vmatpush1.bf16.msra.mxu0 0
    %105 = vmatprep.subr.bf16.mxu0 0
    %106 = vmatpush1.bf16.msra.mxu0 0
    %107 = vmatprep.subr.bf16.mxu0 0
    %108 = vmatpush1.bf16.msra.mxu0 0
    %109 = vmatprep.subr.bf16.mxu0 0
    %110 = vmatpush1.bf16.msra.mxu0 0
    %111 = vmatprep.subr.bf16.mxu0 0
    %112 = vmatpush1.bf16.msra.mxu0 0
    %113 = vmatprep.subr.bf16.mxu0 0
    %114 = vmatpush1.bf16.msra.mxu0 0
    %115 = vmatprep.subr.bf16.mxu0 0
    %116 = vmatpush1.bf16.msra.mxu0 0
    %117 = vmatprep.subr.bf16.mxu0 0
    %118 = vmatpush1.bf16.msra.mxu0 0
    %119 = vmatprep.subr.bf16.mxu0 0
    %120 = vmatpush1.bf16.msra.mxu0 0
    %121 = vmatprep.subr.bf16.mxu0 0
    %122 = vmatpush1.bf16.msra.mxu0 0
    %123 = vmatprep.subr.bf16.mxu0 0
    %124 = vmatpush1.bf16.msra.mxu0 0
    %125 = vmatprep.subr.bf16.mxu0 0
    %126 = vmatpush1.bf16.msra.mxu0 0
    %127 = vmatprep.mubr.bf16.mxu0 0
    %128 = vmatmul.mubr.bf16.gmra.mrb[0].mxu0 %v80
    %v129 = vpop.f32.mrb[0].mxu0
    %v130 = vadd.f32 %v56, %v129
    %v131 = vpop.f32.mrb[0].mxu0
    %v132 = vpop.f32.mrb[0].mxu0
    %v133 = vadd.f32 %v56, %v132
    %v134 = vpop.f32.mrb[0].mxu0
    %135 = vmatprep.mubr.bf16.mxu0 0
    %136 = vmatmul.mubr.bf16.gmra.mrb[0].mxu0 %v83
    %v137 = vpop.f32.mrb[0].mxu0
    %v138 = vadd.f32 %v56, %v137
    %v139 = vpop.f32.mrb[0].mxu0
    %v140 = vpop.f32.mrb[0].mxu0
    %v141 = vadd.f32 %v56, %v140
    %v142 = vpop.f32.mrb[0].mxu0
    %143 = vmatprep.mubr.bf16.mxu0 0
    %144 = vmatmul.mubr.bf16.gmra.mrb[0].mxu0 %v86
    %v145 = vpop.f32.mrb[0].mxu0
    %v146 = vadd.f32 %v56, %v145
    %v147 = vpop.f32.mrb[0].mxu0
    %v148 = vpop.f32.mrb[0].mxu0
    %v149 = vadd.f32 %v56, %v148
    %v150 = vpop.f32.mrb[0].mxu0
    %151 = vmatprep.mubr.bf16.mxu0 0
    %152 = vmatmul.mubr.bf16.gmra.mrb[0].mxu0 %v89
    %v153 = vpop.f32.mrb[0].mxu0
    %v154 = vadd.f32 %v56, %v153
    %v155 = vpop.f32.mrb[0].mxu0
    %v156 = vpop.f32.mrb[0].mxu0
    %v157 = vadd.f32 %v56, %v156
    %v158 = vpop.f32.mrb[0].mxu0
    %159 = vdwg.mxu0
    %v160 = vmax.f32 %v130, 0.0
    %v161 = vmax.f32 %v133, 0.0
    %v162 = vmax.f32 %v138, 0.0
    %v163 = vmax.f32 %v141, 0.0
    %v164 = vmax.f32 %v146, 0.0
    %v165 = vmax.f32 %v149, 0.0
    %v166 = vmax.f32 %v154, 0.0
    %v167 = vmax.f32 %v157, 0.0
    %v168 = vpack.c.bf16 %v161, %v160
    %v169 = vpack.c.bf16 %v163, %v162
    %v170 = vpack.c.bf16 %v165, %v164
    %v171 = vpack.c.bf16 %v167, %v166
    %v172 = vld [vmem:[#allocation2] sm:$0xf]
    %v173 = vld [vmem:[#allocation2 + $0x4] sm:$0xf]
    %v174 = vld [vmem:[#allocation2 + $0x8] sm:$0xf]
    %v175 = vld [vmem:[#allocation2 + $0xc] sm:$0xf]
    %v176 = vld [vmem:[#allocation2 + $0x10] sm:$0xf]
    %v177 = vld [vmem:[#allocation2 + $0x14] sm:$0xf]
    %v178 = vld [vmem:[#allocation2 + $0x18] sm:$0xf]
    %v179 = vld [vmem:[#allocation2 + $0x1c] sm:$0xf]
    %v180 = vld [vmem:[#allocation2 + $0x20] sm:$0xf]
    %v181 = vld [vmem:[#allocation2 + $0x24] sm:$0xf]
    %v182 = vld [vmem:[#allocation2 + $0x28] sm:$0xf]
    %v183 = vld [vmem:[#allocation2 + $0x2c] sm:$0xf]
    %v184 = vld [vmem:[#allocation2 + $0x30] sm:$0xf]
    %v185 = vld [vmem:[#allocation2 + $0x34] sm:$0xf]
    %v186 = vld [vmem:[#allocation2 + $0x38] sm:$0xf]
    %v187 = vld [vmem:[#allocation2 + $0x3c] sm:$0xf]
    %v188 = vld [vmem:[%s4] sm:$0x1]
    %v190 = vlaneseq
    %v191 = vshrl.u32 %v190, 7
    %v192 = vsub.s32 0, %v191
    %v193 = vrot.slane %v188, %v192
    %v211 = vunpack.c.l.b16 %v172
    %v212 = vunpack.c.l.b16 %v173
    %v213 = vunpack.c.l.b16 %v174
    %v214 = vunpack.c.l.b16 %v175
    %v215 = vunpack.c.l.b16 %v176
    %v216 = vunpack.c.l.b16 %v177
    %v217 = vunpack.c.l.b16 %v178
    %v218 = vunpack.c.l.b16 %v179
    %v219 = vunpack.c.l.b16 %v180
    %v220 = vunpack.c.l.b16 %v181
    %v221 = vunpack.c.l.b16 %v182
    %v222 = vunpack.c.l.b16 %v183
    %v223 = vunpack.c.l.b16 %v184
    %v224 = vunpack.c.l.b16 %v185
    %v225 = vunpack.c.l.b16 %v186
    %v226 = vunpack.c.l.b16 %v187
    %v227 = vpack.c.b16 %v212, %v211
    %v228 = vpack.c.b16 %v214, %v213
    %v229 = vpack.c.b16 %v216, %v215
    %v230 = vpack.c.b16 %v218, %v217
    %v231 = vpack.c.b16 %v220, %v219
    %v232 = vpack.c.b16 %v222, %v221
    %v233 = vpack.c.b16 %v224, %v223
    %v234 = vpack.c.b16 %v226, %v225
    %243 = vmatprep.subr.bf16.mxu0 0
    %244 = vmatpush1.bf16.msra.mxu0 %v227
    %245 = vmatprep.subr.bf16.mxu0 0
    %246 = vmatpush1.bf16.msra.mxu0 %v228
    %247 = vmatprep.subr.bf16.mxu0 0
    %248 = vmatpush1.bf16.msra.mxu0 %v229
    %249 = vmatprep.subr.bf16.mxu0 0
    %250 = vmatpush1.bf16.msra.mxu0 %v230
    %251 = vmatprep.subr.bf16.mxu0 0
    %252 = vmatpush1.bf16.msra.mxu0 %v231
    %253 = vmatprep.subr.bf16.mxu0 0
    %254 = vmatpush1.bf16.msra.mxu0 %v232
    %255 = vmatprep.subr.bf16.mxu0 0
    %256 = vmatpush1.bf16.msra.mxu0 %v233
    %257 = vmatprep.subr.bf16.mxu0 0
    %258 = vmatpush1.bf16.msra.mxu0 %v234
    %259 = vmatprep.subr.bf16.mxu0 0
    %260 = vmatpush1.bf16.msra.mxu0 0
    %261 = vmatprep.subr.bf16.mxu0 0
    %262 = vmatpush1.bf16.msra.mxu0 0
    %263 = vmatprep.subr.bf16.mxu0 0
    %264 = vmatpush1.bf16.msra.mxu0 0
    %265 = vmatprep.subr.bf16.mxu0 0
    %266 = vmatpush1.bf16.msra.mxu0 0
    %267 = vmatprep.subr.bf16.mxu0 0
    %268 = vmatpush1.bf16.msra.mxu0 0
    %269 = vmatprep.subr.bf16.mxu0 0
    %270 = vmatpush1.bf16.msra.mxu0 0
    %271 = vmatprep.subr.bf16.mxu0 0
    %272 = vmatpush1.bf16.msra.mxu0 0
    %273 = vmatprep.subr.bf16.mxu0 0
    %274 = vmatpush1.bf16.msra.mxu0 0
    %275 = vmatprep.mubr.bf16.mxu0 0
    %276 = vmatmul.mubr.bf16.gmra.mrb[0].mxu0 %v168
    %v277 = vpop.f32.mrb[0].mxu0
    %v278 = vadd.f32 %v193, %v277
    %v279 = vpop.f32.mrb[0].mxu0
    %v280 = vpop.f32.mrb[0].mxu0
    %v281 = vadd.f32 %v193, %v280
    %v282 = vpop.f32.mrb[0].mxu0
    %283 = vmatprep.mubr.bf16.mxu0 0
    %284 = vmatmul.mubr.bf16.gmra.mrb[0].mxu0 %v169
    %v285 = vpop.f32.mrb[0].mxu0
    %v286 = vadd.f32 %v193, %v285
    %v287 = vpop.f32.mrb[0].mxu0
    %v288 = vpop.f32.mrb[0].mxu0
    %v289 = vadd.f32 %v193, %v288
    %v290 = vpop.f32.mrb[0].mxu0
    %291 = vmatprep.mubr.bf16.mxu0 0
    %292 = vmatmul.mubr.bf16.gmra.mrb[0].mxu0 %v170
    %v293 = vpop.f32.mrb[0].mxu0
    %v294 = vadd.f32 %v193, %v293
    %v295 = vpop.f32.mrb[0].mxu0
    %v296 = vpop.f32.mrb[0].mxu0
    %v297 = vadd.f32 %v193, %v296
    %v298 = vpop.f32.mrb[0].mxu0
    %299 = vmatprep.mubr.bf16.mxu0 0
    %300 = vmatmul.mubr.bf16.gmra.mrb[0].mxu0 %v171
    %v301 = vpop.f32.mrb[0].mxu0
    %v302 = vadd.f32 %v193, %v301
    %v303 = vpop.f32.mrb[0].mxu0
    %v304 = vpop.f32.mrb[0].mxu0
    %v305 = vadd.f32 %v193, %v304
    %v306 = vpop.f32.mrb[0].mxu0
    %307 = vdwg.mxu0
    %v308 = vmax.f32 %v278, 0.0
    %v309 = vmax.f32 %v281, 0.0
    %v310 = vmax.f32 %v286, 0.0
    %v311 = vmax.f32 %v289, 0.0
    %v312 = vmax.f32 %v294, 0.0
    %v313 = vmax.f32 %v297, 0.0
    %v314 = vmax.f32 %v302, 0.0
    %v315 = vmax.f32 %v305, 0.0
    %v316 = vpack.c.bf16 %v309, %v308
    %v317 = vpack.c.bf16 %v311, %v310
    %v318 = vpack.c.bf16 %v313, %v312
    %v319 = vpack.c.bf16 %v315, %v314
    %v320 = vld [vmem:[%s5] sm:$0xf]
    %v321 = vld [vmem:[%s6] sm:$0xff]
    %323 = vset.pattern.permute.xlu0 0
    %324 = vperm.xlu0 %323, %v321
    %v325 = vpop.permute.xlu0 %324
    %327 = vmatprep.subr.bf16.mxu0 0
    %328 = vmatpush1.bf16.xpose.msra.mxu0 %v316
    %329 = vmatprep.subr.bf16.mxu0 0
    %330 = vmatpush1.bf16.xpose.msra.mxu0 %v317
    %331 = vmatprep.subr.bf16.mxu0 0
    %332 = vmatpush1.bf16.xpose.msra.mxu0 %v318
    %333 = vmatprep.subr.bf16.mxu0 0
    %334 = vmatpush1.bf16.xpose.msra.mxu0 %v319
    %335 = vmatprep.subr.bf16.mxu0 0
    %336 = vmatpush1.bf16.xpose.msra.mxu0 0
    %337 = vmatprep.subr.bf16.mxu0 0
    %338 = vmatpush1.bf16.xpose.msra.mxu0 0
    %339 = vmatprep.subr.bf16.mxu0 0
    %340 = vmatpush1.bf16.xpose.msra.mxu0 0
    %341 = vmatprep.subr.bf16.mxu0 0
    %342 = vmatpush1.bf16.xpose.msra.mxu0 0
    %343 = vmatprep.subr.bf16.mxu0 0
    %344 = vmatpush1.bf16.xpose.msra.mxu0 0
    %345 = vmatprep.subr.bf16.mxu0 0
    %346 = vmatpush1.bf16.xpose.msra.mxu0 0
    %347 = vmatprep.subr.bf16.mxu0 0
    %348 = vmatpush1.bf16.xpose.msra.mxu0 0
    %349 = vmatprep.subr.bf16.mxu0 0
    %350 = vmatpush1.bf16.xpose.msra.mxu0 0
    %351 = vmatprep.subr.bf16.mxu0 0
    %352 = vmatpush1.bf16.xpose.msra.mxu0 0
    %353 = vmatprep.subr.bf16.mxu0 0
    %354 = vmatpush1.bf16.xpose.msra.mxu0 0
    %355 = vmatprep.subr.bf16.mxu0 0
    %356 = vmatpush1.bf16.xpose.msra.mxu0 0
    %357 = vmatprep.subr.bf16.mxu0 0
    %358 = vmatpush1.bf16.xpose.msra.mxu0 0
    %359 = vmatprep.mubr.bf16.mxu0 0
    %360 = vmatmul.mubr.bf16.gmra.mrb[0].mxu0 %v320
    %v361 = vpop.f32.mrb[0].mxu0
    %v362 = vadd.f32 %v325, %v361
    %v363 = vpop.f32.mrb[0].mxu0
    %v364 = vpop.f32.mrb[0].mxu0
    %v365 = vpop.f32.mrb[0].mxu0
    %366 = vdwg.mxu0
    %vm367 = vcmask 523264
    %368 = vst.msk [vmem:[#allocation5] sm:$0xff] %vm367, %v362
    // Predicated region
    $region34: #{tpu_custom_call.1} parent=1 // pred_check
      _
    $region35: #{tpu_custom_call.1} parent=1 // pred_check_branch
      %370 = sbr.rel (0) target = $region37
    $region36: #{tpu_custom_call.1} parent=1 // pred_region
      %s372 = ssub.s32 128, 128
      %373 = vsyncadd [#allocation4], %s372
      %s375 = sshll.u32 [#allocation5], 4
      %s376 = int_to_ptr.vmem [resolvable:$true] %s375
      %378 = dma.vmem_to_hbm [thread:$0]  %s376, 128, %s7, [#allocation4]
    $region37: #{tpu_custom_call.1} parent=1 // pred_fallthru
      _
    // Predicated region
    $region38: #{tpu_custom_call.1} parent=1 // pred_check
      _
    $region39: #{tpu_custom_call.1} parent=1 // pred_check_branch
      %380 = sbr.rel (0) target = $region41
    $region40: #{tpu_custom_call.1} parent=1 // pred_region
      %381 = dma.done [#allocation4], 128
    $region41: #{tpu_custom_call.1} parent=1 // pred_fallthru
      _
    %382 = vsyncpa [#allocation3], 1
    %383 = vsyncpa [#allocation4], 1

</llo_original>
